<compile_context>
chip_gen: v6e
topology: v6e:2x2x1
jax: 0.10.0
libtpu: 0.0.40
codegen_flags: <defaults>
</compile_context>

<pallas_src>
import functools

import jax
import jax.numpy as jnp
from jax.experimental import pallas as pl
from jax.experimental.pallas import tpu as pltpu


def _per_row_focal(pred_ref, tgt_ref, *, alpha, gamma, total_n):
    """Per-row focal loss for the current row tile: (rt, 1) f32, invalid rows = 0."""
    i = pl.program_id(0)
    rt = pred_ref.shape[0]

    x = pred_ref[...].astype(jnp.float32)                  # (rt, C)
    t = tgt_ref[...]                                        # (rt, 1) int32
    col = jax.lax.broadcasted_iota(jnp.int32, x.shape, 1)   # (rt, C)

    # One pass over the tile yields both the row max (stable logsumexp shift)
    # and the target logit (one-hot select); exp(x - m) is the second pass.
    m = jnp.max(x, axis=-1, keepdims=True)                                  # (rt, 1)
    x_t = jnp.sum(jnp.where(col == t, x, 0.0), axis=-1, keepdims=True)      # (rt, 1)
    sumexp = jnp.sum(jnp.exp(x - m), axis=-1, keepdims=True)                # (rt, 1)

    ce = (m - x_t) + jnp.log(sumexp)                         # (rt, 1), >= 0
    pt = jnp.exp(-ce)
    mod = jnp.maximum(1.0 - pt, 0.0)
    if gamma == 2.0:
        modg = mod * mod
    elif gamma == 1.0:
        modg = mod
    elif gamma == 0.0:
        modg = jnp.ones_like(mod)
    else:
        modg = jnp.power(mod, jnp.float32(gamma))
    focal = jnp.float32(alpha) * modg * ce                   # (rt, 1)

    # Rows past the true batch size (partial last block) contain garbage; mask
    # with a select so any inf/NaN produced from that garbage cannot leak.
    row = i * rt + jax.lax.broadcasted_iota(jnp.int32, (rt, 1), 0)
    return jnp.where(row < total_n, focal, 0.0)


def _focal_sum_kernel(pred_ref, tgt_ref, out_ref, *, alpha, gamma, total_n):
    """Per-tile partial sum of focal losses (reduction='mean'/'sum')."""
    focal = _per_row_focal(pred_ref, tgt_ref, alpha=alpha, gamma=gamma,
                           total_n=total_n)
    out_ref[...] = jnp.sum(focal, axis=0, keepdims=True).reshape(1, 1, 1)


def _focal_rows_kernel(pred_ref, tgt_ref, out_ref, *, alpha, gamma, total_n):
    """Per-row focal losses (reduction='none')."""
    out_ref[...] = _per_row_focal(pred_ref, tgt_ref, alpha=alpha, gamma=gamma,
                                  total_n=total_n)


def _sublane_multiple(dtype) -> int:
    # f32 -> 8 rows, bf16 -> 16, int8/fp8 -> 32 (packed sublane layouts).
    return max(8, 32 // jnp.dtype(dtype).itemsize)


def focal_loss(pred: jax.Array, target: jax.Array, *, alpha: float = 1.0,
               gamma: float = 2.0, reduction: str = "mean",
               block_bytes: int = 4 * 1024 * 1024,
               max_row_tile: int = 8192) -> jax.Array:
    """pred: (N, C) float, target: (N,) int. Matches FocalLoss.forward
    (scalar alpha, weight=None)."""
    # TODO(synk): per-class `weight` tensors and array-valued `alpha` (alpha[target])
    #             are not implemented; only the scalar-alpha, weight=None path.
    # TODO(synk): vocab-scale C (>~32K classes) would want a class-axis grid with
    #             online-softmax accumulators; here the full class row is one block.
    n, c = pred.shape
    sub = _sublane_multiple(pred.dtype)
    itemsize = jnp.dtype(pred.dtype).itemsize

    # Degenerate tiny batch: pad up to one sublane quantum so the single block
    # never exceeds the array. At most `sub - 1` rows -> negligible copy.
    n_eff = n
    if n < sub:
        pred = jnp.pad(pred, ((0, sub - n), (0, 0)))
        target = jnp.pad(target, (0, sub - n))
        n_eff = sub

    # Row tile: biggest multiple of `sub` whose lane-padded logit block fits the
    # per-buffer budget, capped at max_row_tile and at the batch rounded down to
    # `sub` (so the block never exceeds the array; the last block may be partial
    # and is masked in-kernel).
    c_pad = ((c + 127) // 128) * 128
    bytes_per_row = c_pad * itemsize
    rt = max(sub, (block_bytes // bytes_per_row) // sub * sub)
    rt = min(rt, max_row_tile)
    rt = min(rt, (n_eff // sub) * sub)
    rt = max(rt, sub)

    num_tiles = (n_eff + rt - 1) // rt
    tgt2d = target.astype(jnp.int32).reshape(n_eff, 1)

    # Explicit VMEM budget: double-buffered logits block + targets/output +
    # headroom; safe under v5e's 16 MiB scoped default and v7x's 64 MiB VMEM.
    pred_block_bytes = rt * c_pad * itemsize
    vmem_limit = int(min(64 * 1024 * 1024,
                         max(16 * 1024 * 1024, 4 * pred_block_bytes + (2 << 20))))

    kern_kwargs = dict(alpha=float(alpha), gamma=float(gamma), total_n=n)
    in_specs = [
        pl.BlockSpec((rt, c), lambda i: (i, 0)),   # logits row tile (classes on lanes)
        pl.BlockSpec((rt, 1), lambda i: (i, 0)),   # matching targets
    ]
    compiler_params = pltpu.CompilerParams(
        dimension_semantics=("parallel",),          # independent row tiles (megacore)
        vmem_limit_bytes=vmem_limit,
    )
    extra_transc = 0 if float(gamma) in (0.0, 1.0, 2.0) else n
    flops = n * (5 * c_pad + 12)
    transcendentals = n * (c_pad + 2) + extra_transc   # exp row, exp(-ce), log, [pow]

    if reduction in ("mean", "sum"):
        partials = pl.pallas_call(
            functools.partial(_focal_sum_kernel, **kern_kwargs),
            out_shape=jax.ShapeDtypeStruct((num_tiles, 1, 1), jnp.float32),
            grid=(num_tiles,),
            in_specs=in_specs,
            out_specs=pl.BlockSpec((1, 1, 1), lambda i: (i, 0, 0)),
            compiler_params=compiler_params,
            cost_estimate=pl.CostEstimate(
                flops=flops, transcendentals=transcendentals,
                bytes_accessed=n * c * itemsize + n * 4 + num_tiles * 4),
        )(pred, tgt2d)
        total = jnp.sum(partials)
        if reduction == "mean":
            total = total / jnp.float32(n)
        return total.astype(pred.dtype)

    # reduction == 'none': per-row focal losses.
    per_row = pl.pallas_call(
        functools.partial(_focal_rows_kernel, **kern_kwargs),
        out_shape=jax.ShapeDtypeStruct((n_eff, 1), jnp.float32),
        grid=(num_tiles,),
        in_specs=in_specs,
        out_specs=pl.BlockSpec((rt, 1), lambda i: (i, 0)),
        compiler_params=compiler_params,
        cost_estimate=pl.CostEstimate(
            flops=flops, transcendentals=transcendentals,
            bytes_accessed=n * c * itemsize + n * 4 + n * 4),
    )(pred, tgt2d)
    return per_row[:n, 0].astype(pred.dtype)


def _reference(pred, target, alpha=1.0, gamma=2.0, reduction="mean"):
    logp = jax.nn.log_softmax(pred.astype(jnp.float32), axis=-1)
    ce = -jnp.take_along_axis(logp, target[:, None].astype(jnp.int32), axis=-1)[:, 0]
    pt = jnp.exp(-ce)
    focal = alpha * (1.0 - pt) ** gamma * ce
    if reduction == "mean":
        return jnp.mean(focal)
    if reduction == "sum":
        return jnp.sum(focal)
    return focal


if __name__ == "__main__":
    key = jax.random.PRNGKey(0)
    k1, k2, k3, k4 = jax.random.split(key, 4)

    # Small classification-shaped problem: batch=16 samples, 32 classes.
    N, C = 16, 32
    pred = jax.random.normal(k1, (N, C), dtype=jnp.float32)
    target = jax.random.randint(k2, (N,), 0, C, dtype=jnp.int32)
    loss = jax.block_until_ready(focal_loss(pred, target, alpha=1.0, gamma=2.0))
    ref = _reference(pred, target, 1.0, 2.0)
    assert jnp.allclose(loss, ref, atol=1e-5, rtol=1e-5), (loss, ref)

    # Ragged batch (exercises the unpadded partial last block) + non-default alpha.
    N2, C2 = 13, 10
    pred2 = jax.random.normal(k3, (N2, C2), dtype=jnp.float32)
    target2 = jax.random.randint(k4, (N2,), 0, C2, dtype=jnp.int32)
    loss2 = jax.block_until_ready(focal_loss(pred2, target2, alpha=0.25, gamma=2.0))
    ref2 = _reference(pred2, target2, 0.25, 2.0)
    assert jnp.allclose(loss2, ref2, atol=1e-5, rtol=1e-5), (loss2, ref2)

    # reduction='none' per-row path.
    loss3 = jax.block_until_ready(
        focal_loss(pred2, target2, alpha=0.25, gamma=2.0, reduction="none"))
    ref3 = _reference(pred2, target2, 0.25, 2.0, reduction="none")
    assert loss3.shape == (N2,)
    assert jnp.allclose(loss3, ref3, atol=1e-5, rtol=1e-5), (loss3, ref3)

    print("KERNEL_OK")
</pallas_src>

<mosaic_0001>
module attributes {stable_mosaic.version = 11 : i64} {
  func.func @_focal_sum_kernel(%arg0: i32, %arg1: memref<16x32xf32, #tpu.memory_space<vmem>>, %arg2: memref<16x1xi32, #tpu.memory_space<vmem>>, %arg3: memref<1x1x1xf32, #tpu.memory_space<vmem>>) attributes {dimension_semantics = [#tpu.dimension_semantics<parallel>], iteration_bounds = array<i64: 1>, scalar_prefetch = 0 : i64, scratch_operands = 0 : i64, tpu.core_type = #tpu.core_type<tc>, window_params = [{transform_indices = @transform_0, window_bounds = array<i64: 16, 32>}, {transform_indices = @transform_1, window_bounds = array<i64: 16, 1>}, {transform_indices = @transform_2, window_bounds = array<i64: 1, 1, 1>}]} {
    %c0 = arith.constant 0 : index
    %c0_0 = arith.constant 0 : index
    %0 = vector.load %arg1[%c0, %c0_0] : memref<16x32xf32, #tpu.memory_space<vmem>>, vector<16x32xf32>
    %c0_1 = arith.constant 0 : index
    %c0_2 = arith.constant 0 : index
    %1 = vector.load %arg2[%c0_1, %c0_2] : memref<16x1xi32, #tpu.memory_space<vmem>>, vector<16x1xi32>
    %2 = tpu.iota {dimensions = array<i32: 1>} : vector<16x32xi32>
    %cst = arith.constant dense<0xFF800000> : vector<16xf32>
    %3 = vector.multi_reduction <maximumf>, %0, %cst [1] : vector<16x32xf32> to vector<16xf32>
    %4 = vector.shape_cast %3 : vector<16xf32> to vector<16x1xf32>
    %5 = vector.broadcast %1 : vector<16x1xi32> to vector<16x32xi32>
    %6 = arith.cmpi eq, %2, %5 : vector<16x32xi32>
    %cst_3 = arith.constant 0.000000e+00 : f32
    %7 = vector.broadcast %cst_3 : f32 to vector<16x32xf32>
    %8 = arith.select %6, %0, %7 : vector<16x32xi1>, vector<16x32xf32>
    %cst_4 = arith.constant dense<0.000000e+00> : vector<16xf32>
    %9 = vector.multi_reduction <add>, %8, %cst_4 [1] : vector<16x32xf32> to vector<16xf32>
    %10 = vector.shape_cast %9 : vector<16xf32> to vector<16x1xf32>
    %11 = vector.broadcast %4 : vector<16x1xf32> to vector<16x32xf32>
    %12 = arith.subf %0, %11 : vector<16x32xf32>
    %13 = math.exp %12 : vector<16x32xf32>
    %cst_5 = arith.constant dense<0.000000e+00> : vector<16xf32>
    %14 = vector.multi_reduction <add>, %13, %cst_5 [1] : vector<16x32xf32> to vector<16xf32>
    %15 = vector.shape_cast %14 : vector<16xf32> to vector<16x1xf32>
    %16 = arith.subf %4, %10 : vector<16x1xf32>
    %17 = math.log %15 : vector<16x1xf32>
    %18 = arith.addf %16, %17 : vector<16x1xf32>
    %cst_6 = arith.constant 0.000000e+00 : f32
    %19 = vector.broadcast %cst_6 : f32 to vector<16x1xf32>
    %20 = arith.subf %19, %18 : vector<16x1xf32>
    %21 = math.exp %20 : vector<16x1xf32>
    %cst_7 = arith.constant 1.000000e+00 : f32
    %22 = vector.broadcast %cst_7 : f32 to vector<16x1xf32>
    %23 = arith.subf %22, %21 : vector<16x1xf32>
    %cst_8 = arith.constant 0.000000e+00 : f32
    %24 = vector.broadcast %cst_8 : f32 to vector<16x1xf32>
    %25 = arith.maximumf %23, %24 : vector<16x1xf32>
    %26 = arith.mulf %25, %25 : vector<16x1xf32>
    %cst_9 = arith.constant 1.000000e+00 : f32
    %27 = vector.broadcast %cst_9 : f32 to vector<16x1xf32>
    %28 = arith.mulf %27, %26 : vector<16x1xf32>
    %29 = arith.mulf %28, %18 : vector<16x1xf32>
    %c16_i32 = arith.constant 16 : i32
    %30 = arith.muli %arg0, %c16_i32 : i32
    %31 = tpu.iota {dimensions = array<i32: 0>} : vector<16x1xi32>
    %32 = vector.broadcast %30 : i32 to vector<16x1xi32>
    %33 = arith.addi %32, %31 : vector<16x1xi32>
    %c16_i32_10 = arith.constant 16 : i32
    %34 = vector.broadcast %c16_i32_10 : i32 to vector<16x1xi32>
    %35 = arith.cmpi slt, %33, %34 : vector<16x1xi32>
    %cst_11 = arith.constant 0.000000e+00 : f32
    %36 = vector.broadcast %cst_11 : f32 to vector<16x1xf32>
    %37 = arith.select %35, %29, %36 : vector<16x1xi1>, vector<16x1xf32>
    %cst_12 = arith.constant dense<0.000000e+00> : vector<1xf32>
    %38 = vector.multi_reduction <add>, %37, %cst_12 [0] : vector<16x1xf32> to vector<1xf32>
    %39 = vector.shape_cast %38 : vector<1xf32> to vector<1x1xf32>
    %40 = vector.shape_cast %39 : vector<1x1xf32> to vector<1x1x1xf32>
    %c0_13 = arith.constant 0 : index
    %c0_14 = arith.constant 0 : index
    %c0_15 = arith.constant 0 : index
    %41 = vector.load %arg3[%c0_13, %c0_14, %c0_15] : memref<1x1x1xf32, #tpu.memory_space<vmem>>, vector<1x1x1xf32>
    tpu.vector_store %arg3[%c0_13, %c0_14, %c0_15], %40 {strides = array<i32>} : memref<1x1x1xf32, #tpu.memory_space<vmem>>, vector<1x1x1xf32>,
    return
  }
  func.func @transform_0(%arg0: i32) -> (i32, i32) {
    %c0_i32 = arith.constant 0 : i32
    %c0_i32_0 = arith.constant 0 : i32
    return %arg0, %c0_i32 : i32, i32
  }
  func.func @transform_1(%arg0: i32) -> (i32, i32) {
    %c0_i32 = arith.constant 0 : i32
    %c0_i32_0 = arith.constant 0 : i32
    return %arg0, %c0_i32 : i32, i32
  }
  func.func @transform_2(%arg0: i32) -> (i32, i32, i32) {
    %c0_i32 = arith.constant 0 : i32
    %c0_i32_0 = arith.constant 0 : i32
    %c0_i32_1 = arith.constant 0 : i32
    return %arg0, %c0_i32, %c0_i32_0 : i32, i32, i32
  }
}

</mosaic_0001>

<llo_original>
// kernel: tpu_custom_call.1
$region0: #{tpu_custom_call.1}
  #allocation0 [shape = 'u32[]', space=smem, size = 0x4, offset = 0x4, fixed_abs, tag = 'smem constant byte address 0x4 - core index']
  #allocation1 [shape = 'u32[144,128]{1,0:T(1,128)}', space=vmem, size = 0x12000, scoped, tag = 'internal scratch']
  %s0 = inlined_call_operand.vmem [shape: f32[16,32], index: 0, kind: input, shape index: {}]
  %s1 = inlined_call_operand.vmem [shape: s32[16,1], index: 1, kind: input, shape index: {}]
  %s2 = inlined_call_operand.hbm [shape: f32[1,1,1], index: 2, kind: output, shape index: {}]
  %s3 = sld [smem:[#allocation0]]
  $region18: #{tpu_custom_call.1} parent=0
    _
  %s5 = ssub.s32 1, %s3
  %s6 = scalar_select 0, %s5, %s3
  $region1: #{tpu_custom_call.1} parent=0
    #allocation2 [shape = 'u8[512]{0}', space=vmem, size = 0x400, scoped, tag = 'output window, operand 0, single buffered']
    #allocation3 [shape = 's32[1]{0}', space=sflag, size = 0x4, scoped, tag = 'scoped memory for tpu_custom_call.1']
    %7 = vsyncpa [#allocation3], 0
    // Predicated region
    $region2: #{tpu_custom_call.1} parent=1 // pred_check
      _
    $region3: #{tpu_custom_call.1} parent=1 // pred_check_branch
      %9 = sbr.rel (0) target = $region5
    $region4: #{tpu_custom_call.1} parent=1 // pred_region
      _
    $region5: #{tpu_custom_call.1} parent=1 // pred_fallthru
      _
    // Predicated region
    $region6: #{tpu_custom_call.1} parent=1 // pred_check
      _
    $region7: #{tpu_custom_call.1} parent=1 // pred_check_branch
      %11 = sbr.rel (0) target = $region9
    $region8: #{tpu_custom_call.1} parent=1 // pred_region
      _
    $region9: #{tpu_custom_call.1} parent=1 // pred_fallthru
      _
    %v12 = vld [vmem:[%s0] sm:$0xff]
    %v13 = vld [vmem:[%s0 + $0x8] sm:$0xff]
    %v14 = vld [vmem:[%s1] sm:$0xff]
    %v15 = vld [vmem:[%s1 + $0x8] sm:$0xff]
    %v16 = vlaneseq
    %v17 = vand.u32 %v16, 127
    %vm18 = vcmask 261120
    %v19 = vsel %vm18, %v12, -inf
    %20 = vmax.xlane.f32.xlu0 %v19
    %v21 = vpop.xlane.xlu0 %20
    %v22 = vsel %vm18, %v13, -inf
    %23 = vmax.xlane.f32.xlu0 %v22
    %v24 = vpop.xlane.xlu0 %23
    %25 = vset.pattern.permute.xlu0 0
    %26 = vperm.xlu0 %25, %v14
    %v27 = vpop.permute.xlu0 %26
    %28 = vset.pattern.permute.xlu0 0
    %29 = vperm.xlu0 %28, %v15
    %v30 = vpop.permute.xlu0 %29
    %vm31 = vcmp.eq.s32.totalorder %v17, %v27
    %vm32 = vcmp.eq.s32.totalorder %v17, %v30
    %v33 = vsel %vm31, %v12, 0.0
    %v34 = vsel %vm32, %v13, 0.0
    %v35 = vsel %vm18, %v33, 0.0
    %36 = vadd.xlane.f32.xlu0 %v35
    %v37 = vpop.xlane.xlu0 %36
    %v38 = vsel %vm18, %v34, 0.0
    %39 = vadd.xlane.f32.xlu0 %v38
    %v40 = vpop.xlane.xlu0 %39
    %v41 = vsub.f32 %v12, %v21
    %v42 = vsub.f32 %v13, %v24
    %v43 = vmul.f32 %v41, 1.442695
    %v44 = vpow.pop %v43
    %v45 = vmul.f32 %v42, 1.442695
    %v46 = vpow.pop %v45
    %v47 = vsel %vm18, %v44, 0.0
    %48 = vadd.xlane.f32.xlu0 %v47
    %v49 = vpop.xlane.xlu0 %48
    %v50 = vsel %vm18, %v46, 0.0
    %51 = vadd.xlane.f32.xlu0 %v50
    %v52 = vpop.xlane.xlu0 %51
    %v53 = vsub.f32 %v21, %v37
    %v54 = vsub.f32 %v24, %v40
    %v55 = vlog2.pop %v49
    %v56 = vmul.f32 %v55, 0.6931472
    %v57 = vlog2.pop %v52
    %v58 = vmul.f32 %v57, 0.6931472
    %v59 = vadd.f32 %v53, %v56
    %v60 = vadd.f32 %v54, %v58
    %v61 = vsub.f32 0.0, %v59
    %v62 = vsub.f32 0.0, %v60
    %v63 = vmul.f32 %v61, 1.442695
    %v64 = vpow.pop %v63
    %v65 = vmul.f32 %v62, 1.442695
    %v66 = vpow.pop %v65
    %v67 = vsub.f32 1.0, %v64
    %v68 = vsub.f32 1.0, %v66
    %v69 = vmax.f32 %v67, 0.0
    %v70 = vmax.f32 %v68, 0.0
    %v71 = vmul.f32 %v69, %v69
    %v72 = vmul.f32 %v70, %v70
    %v73 = vmul.f32 %v71, %v59
    %v74 = vmul.f32 %v72, %v60
    %s75 = smul.u32 0, 16
    %v76 = vlaneseq
    %v77 = vshrl.u32 %v76, 7
    %v78 = vadd.s32 %v77, 8
    %v79 = vstv %s75
    %v80 = vadd.s32 %v79, %v77
    %v81 = vadd.s32 %v79, %v78
    %vm82 = vcmp.lt.s32.totalorder %v80, 16
    %vm83 = vcmp.lt.s32.totalorder %v81, 16
    %v84 = vsel %vm82, %v73, 0.0
    %v85 = vsel %vm83, %v74, 0.0
    %v86 = vadd.f32 %v84, %v85
    %v87 = vrot.slane %v86, 4
    %v88 = vadd.f32 %v86, %v87
    %v89 = vrot.slane %v88, 2
    %v90 = vadd.f32 %v88, %v89
    %v91 = vrot.slane %v90, 1
    %v92 = vadd.f32 %v90, %v91
    %vm93 = vcmask 0
    %94 = vst.msk [vmem:[#allocation2] sm:$0x1] %vm93, %v92
    // Predicated region
    $region10: #{tpu_custom_call.1} parent=1 // pred_check
      _
    $region11: #{tpu_custom_call.1} parent=1 // pred_check_branch
      %96 = sbr.rel (0) target = $region13
    $region12: #{tpu_custom_call.1} parent=1 // pred_region
      %s98 = ssub.s32 16, 16
      %99 = vsyncadd [#allocation3], %s98
      %s101 = sshll.u32 [#allocation2], 4
      %s102 = int_to_ptr.vmem [resolvable:$true] %s101
      %104 = dma.vmem_to_hbm [thread:$0]  %s102, 16, %s2, [#allocation3]
    $region13: #{tpu_custom_call.1} parent=1 // pred_fallthru
      _
    // Predicated region
    $region14: #{tpu_custom_call.1} parent=1 // pred_check
      _
    $region15: #{tpu_custom_call.1} parent=1 // pred_check_branch
      %106 = sbr.rel (0) target = $region17
    $region16: #{tpu_custom_call.1} parent=1 // pred_region
      %107 = dma.done [#allocation3], 16
    $region17: #{tpu_custom_call.1} parent=1 // pred_fallthru
      _
    %108 = vsyncpa [#allocation3], 1

</llo_original>
